<compile_context>
chip_gen: v6e
topology: v6e:2x2x1
jax: 0.10.0
libtpu: 0.0.40
codegen_flags: <defaults>
</compile_context>

<pallas_src>
import functools

import jax
import jax.numpy as jnp
from jax.experimental import pallas as pl
from jax.experimental.pallas import tpu as pltpu


def _embedding_kernel(ids_ref, tok_hbm, pos_ref, o_ref, rows_vmem, sems, *,
                      scale, seq_len, tile_s, n_sem):
    # ids_ref  : (B*S,) int32 in SMEM (scalar prefetch)
    # tok_hbm  : (V, D) token table, left in HBM (memory_space=pl.ANY)
    # pos_ref  : (tile_s, D) positional tile (auto-pipelined VMEM block)
    # o_ref    : (tile_s, D) output tile (batch dim squeezed)
    # rows_vmem: (tile_s, D) VMEM scratch for the gathered rows
    # sems     : (n_sem,) DMA semaphores (sliding window of in-flight row gathers)
    b = pl.program_id(0)
    st = pl.program_id(1)
    base = b * seq_len + st * tile_s  # flat offset into the (B*S,) id vector

    in_flight = []
    for r in range(tile_s):
        if len(in_flight) == n_sem:
            # Oldest in-flight copy used sem slot (r - n_sem) % n_sem == r % n_sem:
            # retire it before reusing that slot.
            in_flight.pop(0).wait()
        tok_id = ids_ref[base + r]
        cp = pltpu.make_async_copy(
            tok_hbm.at[pl.ds(tok_id, 1), :],
            rows_vmem.at[pl.ds(r, 1), :],
            sems.at[r % n_sem],
        )
        cp.start()
        in_flight.append(cp)
    for cp in in_flight:
        cp.wait()

    rows = rows_vmem[...].astype(jnp.float32)
    pos = pos_ref[...].astype(jnp.float32)
    o_ref[...] = (rows * scale + pos).astype(o_ref.dtype)


def _choose_tile_s(seq_len: int, max_tile: int = 64) -> int:
    """Pick a seq-tile size: full sequence if small, else the largest multiple-of-8 divisor."""
    if seq_len <= max_tile:
        return seq_len
    best = None
    for t in range(8, max_tile + 1, 8):
        if seq_len % t == 0:
            best = t
    return best if best is not None else seq_len  # fallback: whole sequence per step


def embedding_forward(sequence, token_weight, pos_weight, *, tile_s=None, max_in_flight=16):
    """sequence: [B, S] int; token_weight: [V, D]; pos_weight: [max_len, D] (max_len == S)."""
    B, S = sequence.shape
    V, D = token_weight.shape
    L, D2 = pos_weight.shape
    assert D2 == D
    assert L == S, "PyTorch module adds the full positional table: seq_len must equal max_len"
    scale = float(D) ** 0.5

    if tile_s is None:
        tile_s = _choose_tile_s(S)
    assert S % tile_s == 0, "seq tile must divide the sequence length"
    n_seq_tiles = S // tile_s
    n_sem = min(tile_s, max_in_flight)

    # PyTorch nn.Embedding would raise on OOB ids; clamp instead (keeps the DMA in-bounds).
    ids = jnp.clip(sequence.reshape(B * S).astype(jnp.int32), 0, V - 1)

    kernel = functools.partial(
        _embedding_kernel, scale=scale, seq_len=S, tile_s=tile_s, n_sem=n_sem)

    out = pl.pallas_call(
        kernel,
        out_shape=jax.ShapeDtypeStruct((B, S, D), token_weight.dtype),
        grid_spec=pltpu.PrefetchScalarGridSpec(
            num_scalar_prefetch=1,
            grid=(B, n_seq_tiles),
            in_specs=[
                # Token table stays in HBM; rows are gathered with manual DMAs in the kernel.
                pl.BlockSpec(memory_space=pl.ANY),
                # Positional tile: ordinary auto-pipelined VMEM block.
                pl.BlockSpec((tile_s, D), lambda b, s, ids_ref: (s, 0)),
            ],
            out_specs=pl.BlockSpec((None, tile_s, D), lambda b, s, ids_ref: (b, s, 0)),
            scratch_shapes=[
                pltpu.VMEM((tile_s, D), token_weight.dtype),
                pltpu.SemaphoreType.DMA((n_sem,)),
            ],
        ),
        compiler_params=pltpu.CompilerParams(
            dimension_semantics=("parallel", "arbitrary")),
    )(ids, token_weight, pos_weight)

    return out


if __name__ == "__main__":
    # Small config consistent with the module; D chosen lane-dense (multiple of 128).
    vocab_size = 64
    embed_size = 128
    max_len = 16          # seq_len must equal max_len for the positional add
    pad_token = 0
    batch = 2

    key = jax.random.PRNGKey(0)
    k_tok, k_pos, k_seq = jax.random.split(key, 3)

    # nn.Embedding default init N(0,1); padding_idx row zeroed (kept f32 for exact parity).
    token_weight = jax.random.normal(k_tok, (vocab_size, embed_size), dtype=jnp.float32)
    token_weight = token_weight.at[pad_token].set(0.0)
    pos_weight = jax.random.normal(k_pos, (max_len, embed_size), dtype=jnp.float32)

    sequence = jax.random.randint(k_seq, (batch, max_len), 0, vocab_size, dtype=jnp.int32)

    out = embedding_forward(sequence, token_weight, pos_weight)
    out = jax.block_until_ready(out)

    # Pure-JAX reference (same semantics as the PyTorch forward in eval mode: dropout = identity).
    ref = token_weight[sequence] * (embed_size ** 0.5) + pos_weight[None, :, :]
    assert out.shape == (batch, max_len, embed_size)
    assert jnp.allclose(out, ref, atol=1e-5, rtol=1e-5)

    print("KERNEL_OK")
</pallas_src>

<mosaic_0001>
module attributes {stable_mosaic.version = 11 : i64} {
  func.func @_embedding_kernel(%arg0: i32, %arg1: i32, %arg2: memref<32xi32, #tpu.memory_space<smem>>, %arg3: memref<64x128xf32, #tpu.memory_space<any>>, %arg4: memref<16x128xf32, #tpu.memory_space<vmem>>, %arg5: memref<1x16x128xf32, #tpu.memory_space<vmem>>, %arg6: memref<16x128xf32, #tpu.memory_space<vmem>>, %arg7: memref<16x!tpu.dma_semaphore, #tpu.memory_space<semaphore_mem>>) attributes {dimension_semantics = [#tpu.dimension_semantics<parallel>, #tpu.dimension_semantics<arbitrary>], iteration_bounds = array<i64: 2, 1>, scalar_prefetch = 1 : i64, scratch_operands = 2 : i64, tpu.core_type = #tpu.core_type<tc>, window_params = [{}, {transform_indices = @transform_1, window_bounds = array<i64: 16, 128>}, {transform_indices = @transform_2, window_bounds = array<i64: 1, 16, 128>}]} {
    %c16_i32 = arith.constant 16 : i32
    %0 = arith.muli %arg0, %c16_i32 : i32
    %c16_i32_0 = arith.constant 16 : i32
    %1 = arith.muli %arg1, %c16_i32_0 : i32
    %2 = arith.addi %0, %1 : i32
    %c0_i32 = arith.constant 0 : i32
    %3 = arith.addi %2, %c0_i32 : i32
    %4 = arith.index_cast %3 : i32 to index
    %5 = memref.load %arg2[%4] : memref<32xi32, #tpu.memory_space<smem>>
    %c0_i32_1 = arith.constant 0 : i32
    %c0_i32_2 = arith.constant 0 : i32
    %6 = tpu.memref_slice %arg3[%5, %c0_i32_2] : memref<64x128xf32, #tpu.memory_space<any>> -> memref<1x128xf32, #tpu.memory_space<any>>
    %c0_i32_3 = arith.constant 0 : i32
    %c0_i32_4 = arith.constant 0 : i32
    %7 = tpu.memref_slice %arg6[%c0_i32_3, %c0_i32_4] : memref<16x128xf32, #tpu.memory_space<vmem>> -> memref<1x128xf32, #tpu.memory_space<vmem>>
    %8 = tpu.memref_slice %arg7[%c0_i32_1] : memref<16x!tpu.dma_semaphore, #tpu.memory_space<semaphore_mem>> -> memref<1x!tpu.dma_semaphore, #tpu.memory_space<semaphore_mem>>
    %9 = tpu.memref_squeeze %8 : memref<1x!tpu.dma_semaphore, #tpu.memory_space<semaphore_mem>> -> memref<!tpu.dma_semaphore, #tpu.memory_space<semaphore_mem>>
    tpu.enqueue_dma source(%6 : memref<1x128xf32, #tpu.memory_space<any>>) target(%7 : memref<1x128xf32, #tpu.memory_space<vmem>>) target_semaphore(%9 : memref<!tpu.dma_semaphore, #tpu.memory_space<semaphore_mem>>)
    %c1_i32 = arith.constant 1 : i32
    %10 = arith.addi %2, %c1_i32 : i32
    %11 = arith.index_cast %10 : i32 to index
    %12 = memref.load %arg2[%11] : memref<32xi32, #tpu.memory_space<smem>>
    %c1_i32_5 = arith.constant 1 : i32
    %c0_i32_6 = arith.constant 0 : i32
    %13 = tpu.memref_slice %arg3[%12, %c0_i32_6] : memref<64x128xf32, #tpu.memory_space<any>> -> memref<1x128xf32, #tpu.memory_space<any>>
    %c1_i32_7 = arith.constant 1 : i32
    %c0_i32_8 = arith.constant 0 : i32
    %14 = tpu.memref_slice %arg6[%c1_i32_7, %c0_i32_8] : memref<16x128xf32, #tpu.memory_space<vmem>> -> memref<1x128xf32, #tpu.memory_space<vmem>>
    %15 = tpu.memref_slice %arg7[%c1_i32_5] : memref<16x!tpu.dma_semaphore, #tpu.memory_space<semaphore_mem>> -> memref<1x!tpu.dma_semaphore, #tpu.memory_space<semaphore_mem>>
    %16 = tpu.memref_squeeze %15 : memref<1x!tpu.dma_semaphore, #tpu.memory_space<semaphore_mem>> -> memref<!tpu.dma_semaphore, #tpu.memory_space<semaphore_mem>>
    tpu.enqueue_dma source(%13 : memref<1x128xf32, #tpu.memory_space<any>>) target(%14 : memref<1x128xf32, #tpu.memory_space<vmem>>) target_semaphore(%16 : memref<!tpu.dma_semaphore, #tpu.memory_space<semaphore_mem>>)
    %c2_i32 = arith.constant 2 : i32
    %17 = arith.addi %2, %c2_i32 : i32
    %18 = arith.index_cast %17 : i32 to index
    %19 = memref.load %arg2[%18] : memref<32xi32, #tpu.memory_space<smem>>
    %c2_i32_9 = arith.constant 2 : i32
    %c0_i32_10 = arith.constant 0 : i32
    %20 = tpu.memref_slice %arg3[%19, %c0_i32_10] : memref<64x128xf32, #tpu.memory_space<any>> -> memref<1x128xf32, #tpu.memory_space<any>>
    %c2_i32_11 = arith.constant 2 : i32
    %c0_i32_12 = arith.constant 0 : i32
    %21 = tpu.memref_slice %arg6[%c2_i32_11, %c0_i32_12] : memref<16x128xf32, #tpu.memory_space<vmem>> -> memref<1x128xf32, #tpu.memory_space<vmem>>
    %22 = tpu.memref_slice %arg7[%c2_i32_9] : memref<16x!tpu.dma_semaphore, #tpu.memory_space<semaphore_mem>> -> memref<1x!tpu.dma_semaphore, #tpu.memory_space<semaphore_mem>>
    %23 = tpu.memref_squeeze %22 : memref<1x!tpu.dma_semaphore, #tpu.memory_space<semaphore_mem>> -> memref<!tpu.dma_semaphore, #tpu.memory_space<semaphore_mem>>
    tpu.enqueue_dma source(%20 : memref<1x128xf32, #tpu.memory_space<any>>) target(%21 : memref<1x128xf32, #tpu.memory_space<vmem>>) target_semaphore(%23 : memref<!tpu.dma_semaphore, #tpu.memory_space<semaphore_mem>>)
    %c3_i32 = arith.constant 3 : i32
    %24 = arith.addi %2, %c3_i32 : i32
    %25 = arith.index_cast %24 : i32 to index
    %26 = memref.load %arg2[%25] : memref<32xi32, #tpu.memory_space<smem>>
    %c3_i32_13 = arith.constant 3 : i32
    %c0_i32_14 = arith.constant 0 : i32
    %27 = tpu.memref_slice %arg3[%26, %c0_i32_14] : memref<64x128xf32, #tpu.memory_space<any>> -> memref<1x128xf32, #tpu.memory_space<any>>
    %c3_i32_15 = arith.constant 3 : i32
    %c0_i32_16 = arith.constant 0 : i32
    %28 = tpu.memref_slice %arg6[%c3_i32_15, %c0_i32_16] : memref<16x128xf32, #tpu.memory_space<vmem>> -> memref<1x128xf32, #tpu.memory_space<vmem>>
    %29 = tpu.memref_slice %arg7[%c3_i32_13] : memref<16x!tpu.dma_semaphore, #tpu.memory_space<semaphore_mem>> -> memref<1x!tpu.dma_semaphore, #tpu.memory_space<semaphore_mem>>
    %30 = tpu.memref_squeeze %29 : memref<1x!tpu.dma_semaphore, #tpu.memory_space<semaphore_mem>> -> memref<!tpu.dma_semaphore, #tpu.memory_space<semaphore_mem>>
    tpu.enqueue_dma source(%27 : memref<1x128xf32, #tpu.memory_space<any>>) target(%28 : memref<1x128xf32, #tpu.memory_space<vmem>>) target_semaphore(%30 : memref<!tpu.dma_semaphore, #tpu.memory_space<semaphore_mem>>)
    %c4_i32 = arith.constant 4 : i32
    %31 = arith.addi %2, %c4_i32 : i32
    %32 = arith.index_cast %31 : i32 to index
    %33 = memref.load %arg2[%32] : memref<32xi32, #tpu.memory_space<smem>>
    %c4_i32_17 = arith.constant 4 : i32
    %c0_i32_18 = arith.constant 0 : i32
    %34 = tpu.memref_slice %arg3[%33, %c0_i32_18] : memref<64x128xf32, #tpu.memory_space<any>> -> memref<1x128xf32, #tpu.memory_space<any>>
    %c4_i32_19 = arith.constant 4 : i32
    %c0_i32_20 = arith.constant 0 : i32
    %35 = tpu.memref_slice %arg6[%c4_i32_19, %c0_i32_20] : memref<16x128xf32, #tpu.memory_space<vmem>> -> memref<1x128xf32, #tpu.memory_space<vmem>>
    %36 = tpu.memref_slice %arg7[%c4_i32_17] : memref<16x!tpu.dma_semaphore, #tpu.memory_space<semaphore_mem>> -> memref<1x!tpu.dma_semaphore, #tpu.memory_space<semaphore_mem>>
    %37 = tpu.memref_squeeze %36 : memref<1x!tpu.dma_semaphore, #tpu.memory_space<semaphore_mem>> -> memref<!tpu.dma_semaphore, #tpu.memory_space<semaphore_mem>>
    tpu.enqueue_dma source(%34 : memref<1x128xf32, #tpu.memory_space<any>>) target(%35 : memref<1x128xf32, #tpu.memory_space<vmem>>) target_semaphore(%37 : memref<!tpu.dma_semaphore, #tpu.memory_space<semaphore_mem>>)
    %c5_i32 = arith.constant 5 : i32
    %38 = arith.addi %2, %c5_i32 : i32
    %39 = arith.index_cast %38 : i32 to index
    %40 = memref.load %arg2[%39] : memref<32xi32, #tpu.memory_space<smem>>
    %c5_i32_21 = arith.constant 5 : i32
    %c0_i32_22 = arith.constant 0 : i32
    %41 = tpu.memref_slice %arg3[%40, %c0_i32_22] : memref<64x128xf32, #tpu.memory_space<any>> -> memref<1x128xf32, #tpu.memory_space<any>>
    %c5_i32_23 = arith.constant 5 : i32
    %c0_i32_24 = arith.constant 0 : i32
    %42 = tpu.memref_slice %arg6[%c5_i32_23, %c0_i32_24] : memref<16x128xf32, #tpu.memory_space<vmem>> -> memref<1x128xf32, #tpu.memory_space<vmem>>
    %43 = tpu.memref_slice %arg7[%c5_i32_21] : memref<16x!tpu.dma_semaphore, #tpu.memory_space<semaphore_mem>> -> memref<1x!tpu.dma_semaphore, #tpu.memory_space<semaphore_mem>>
    %44 = tpu.memref_squeeze %43 : memref<1x!tpu.dma_semaphore, #tpu.memory_space<semaphore_mem>> -> memref<!tpu.dma_semaphore, #tpu.memory_space<semaphore_mem>>
    tpu.enqueue_dma source(%41 : memref<1x128xf32, #tpu.memory_space<any>>) target(%42 : memref<1x128xf32, #tpu.memory_space<vmem>>) target_semaphore(%44 : memref<!tpu.dma_semaphore, #tpu.memory_space<semaphore_mem>>)
    %c6_i32 = arith.constant 6 : i32
    %45 = arith.addi %2, %c6_i32 : i32
    %46 = arith.index_cast %45 : i32 to index
    %47 = memref.load %arg2[%46] : memref<32xi32, #tpu.memory_space<smem>>
    %c6_i32_25 = arith.constant 6 : i32
    %c0_i32_26 = arith.constant 0 : i32
    %48 = tpu.memref_slice %arg3[%47, %c0_i32_26] : memref<64x128xf32, #tpu.memory_space<any>> -> memref<1x128xf32, #tpu.memory_space<any>>
    %c6_i32_27 = arith.constant 6 : i32
    %c0_i32_28 = arith.constant 0 : i32
    %49 = tpu.memref_slice %arg6[%c6_i32_27, %c0_i32_28] : memref<16x128xf32, #tpu.memory_space<vmem>> -> memref<1x128xf32, #tpu.memory_space<vmem>>
    %50 = tpu.memref_slice %arg7[%c6_i32_25] : memref<16x!tpu.dma_semaphore, #tpu.memory_space<semaphore_mem>> -> memref<1x!tpu.dma_semaphore, #tpu.memory_space<semaphore_mem>>
    %51 = tpu.memref_squeeze %50 : memref<1x!tpu.dma_semaphore, #tpu.memory_space<semaphore_mem>> -> memref<!tpu.dma_semaphore, #tpu.memory_space<semaphore_mem>>
    tpu.enqueue_dma source(%48 : memref<1x128xf32, #tpu.memory_space<any>>) target(%49 : memref<1x128xf32, #tpu.memory_space<vmem>>) target_semaphore(%51 : memref<!tpu.dma_semaphore, #tpu.memory_space<semaphore_mem>>)
    %c7_i32 = arith.constant 7 : i32
    %52 = arith.addi %2, %c7_i32 : i32
    %53 = arith.index_cast %52 : i32 to index
    %54 = memref.load %arg2[%53] : memref<32xi32, #tpu.memory_space<smem>>
    %c7_i32_29 = arith.constant 7 : i32
    %c0_i32_30 = arith.constant 0 : i32
    %55 = tpu.memref_slice %arg3[%54, %c0_i32_30] : memref<64x128xf32, #tpu.memory_space<any>> -> memref<1x128xf32, #tpu.memory_space<any>>
    %c7_i32_31 = arith.constant 7 : i32
    %c0_i32_32 = arith.constant 0 : i32
    %56 = tpu.memref_slice %arg6[%c7_i32_31, %c0_i32_32] : memref<16x128xf32, #tpu.memory_space<vmem>> -> memref<1x128xf32, #tpu.memory_space<vmem>>
    %57 = tpu.memref_slice %arg7[%c7_i32_29] : memref<16x!tpu.dma_semaphore, #tpu.memory_space<semaphore_mem>> -> memref<1x!tpu.dma_semaphore, #tpu.memory_space<semaphore_mem>>
    %58 = tpu.memref_squeeze %57 : memref<1x!tpu.dma_semaphore, #tpu.memory_space<semaphore_mem>> -> memref<!tpu.dma_semaphore, #tpu.memory_space<semaphore_mem>>
    tpu.enqueue_dma source(%55 : memref<1x128xf32, #tpu.memory_space<any>>) target(%56 : memref<1x128xf32, #tpu.memory_space<vmem>>) target_semaphore(%58 : memref<!tpu.dma_semaphore, #tpu.memory_space<semaphore_mem>>)
    %c8_i32 = arith.constant 8 : i32
    %59 = arith.addi %2, %c8_i32 : i32
    %60 = arith.index_cast %59 : i32 to index
    %61 = memref.load %arg2[%60] : memref<32xi32, #tpu.memory_space<smem>>
    %c8_i32_33 = arith.constant 8 : i32
    %c0_i32_34 = arith.constant 0 : i32
    %62 = tpu.memref_slice %arg3[%61, %c0_i32_34] : memref<64x128xf32, #tpu.memory_space<any>> -> memref<1x128xf32, #tpu.memory_space<any>>
    %c8_i32_35 = arith.constant 8 : i32
    %c0_i32_36 = arith.constant 0 : i32
    %63 = tpu.memref_slice %arg6[%c8_i32_35, %c0_i32_36] : memref<16x128xf32, #tpu.memory_space<vmem>> -> memref<1x128xf32, #tpu.memory_space<vmem>>
    %64 = tpu.memref_slice %arg7[%c8_i32_33] : memref<16x!tpu.dma_semaphore, #tpu.memory_space<semaphore_mem>> -> memref<1x!tpu.dma_semaphore, #tpu.memory_space<semaphore_mem>>
    %65 = tpu.memref_squeeze %64 : memref<1x!tpu.dma_semaphore, #tpu.memory_space<semaphore_mem>> -> memref<!tpu.dma_semaphore, #tpu.memory_space<semaphore_mem>>
    tpu.enqueue_dma source(%62 : memref<1x128xf32, #tpu.memory_space<any>>) target(%63 : memref<1x128xf32, #tpu.memory_space<vmem>>) target_semaphore(%65 : memref<!tpu.dma_semaphore, #tpu.memory_space<semaphore_mem>>)
    %c9_i32 = arith.constant 9 : i32
    %66 = arith.addi %2, %c9_i32 : i32
    %67 = arith.index_cast %66 : i32 to index
    %68 = memref.load %arg2[%67] : memref<32xi32, #tpu.memory_space<smem>>
    %c9_i32_37 = arith.constant 9 : i32
    %c0_i32_38 = arith.constant 0 : i32
    %69 = tpu.memref_slice %arg3[%68, %c0_i32_38] : memref<64x128xf32, #tpu.memory_space<any>> -> memref<1x128xf32, #tpu.memory_space<any>>
    %c9_i32_39 = arith.constant 9 : i32
    %c0_i32_40 = arith.constant 0 : i32
    %70 = tpu.memref_slice %arg6[%c9_i32_39, %c0_i32_40] : memref<16x128xf32, #tpu.memory_space<vmem>> -> memref<1x128xf32, #tpu.memory_space<vmem>>
    %71 = tpu.memref_slice %arg7[%c9_i32_37] : memref<16x!tpu.dma_semaphore, #tpu.memory_space<semaphore_mem>> -> memref<1x!tpu.dma_semaphore, #tpu.memory_space<semaphore_mem>>
    %72 = tpu.memref_squeeze %71 : memref<1x!tpu.dma_semaphore, #tpu.memory_space<semaphore_mem>> -> memref<!tpu.dma_semaphore, #tpu.memory_space<semaphore_mem>>
    tpu.enqueue_dma source(%69 : memref<1x128xf32, #tpu.memory_space<any>>) target(%70 : memref<1x128xf32, #tpu.memory_space<vmem>>) target_semaphore(%72 : memref<!tpu.dma_semaphore, #tpu.memory_space<semaphore_mem>>)
    %c10_i32 = arith.constant 10 : i32
    %73 = arith.addi %2, %c10_i32 : i32
    %74 = arith.index_cast %73 : i32 to index
    %75 = memref.load %arg2[%74] : memref<32xi32, #tpu.memory_space<smem>>
    %c10_i32_41 = arith.constant 10 : i32
    %c0_i32_42 = arith.constant 0 : i32
    %76 = tpu.memref_slice %arg3[%75, %c0_i32_42] : memref<64x128xf32, #tpu.memory_space<any>> -> memref<1x128xf32, #tpu.memory_space<any>>
    %c10_i32_43 = arith.constant 10 : i32
    %c0_i32_44 = arith.constant 0 : i32
    %77 = tpu.memref_slice %arg6[%c10_i32_43, %c0_i32_44] : memref<16x128xf32, #tpu.memory_space<vmem>> -> memref<1x128xf32, #tpu.memory_space<vmem>>
    %78 = tpu.memref_slice %arg7[%c10_i32_41] : memref<16x!tpu.dma_semaphore, #tpu.memory_space<semaphore_mem>> -> memref<1x!tpu.dma_semaphore, #tpu.memory_space<semaphore_mem>>
    %79 = tpu.memref_squeeze %78 : memref<1x!tpu.dma_semaphore, #tpu.memory_space<semaphore_mem>> -> memref<!tpu.dma_semaphore, #tpu.memory_space<semaphore_mem>>
    tpu.enqueue_dma source(%76 : memref<1x128xf32, #tpu.memory_space<any>>) target(%77 : memref<1x128xf32, #tpu.memory_space<vmem>>) target_semaphore(%79 : memref<!tpu.dma_semaphore, #tpu.memory_space<semaphore_mem>>)
    %c11_i32 = arith.constant 11 : i32
    %80 = arith.addi %2, %c11_i32 : i32
    %81 = arith.index_cast %80 : i32 to index
    %82 = memref.load %arg2[%81] : memref<32xi32, #tpu.memory_space<smem>>
    %c11_i32_45 = arith.constant 11 : i32
    %c0_i32_46 = arith.constant 0 : i32
    %83 = tpu.memref_slice %arg3[%82, %c0_i32_46] : memref<64x128xf32, #tpu.memory_space<any>> -> memref<1x128xf32, #tpu.memory_space<any>>
    %c11_i32_47 = arith.constant 11 : i32
    %c0_i32_48 = arith.constant 0 : i32
    %84 = tpu.memref_slice %arg6[%c11_i32_47, %c0_i32_48] : memref<16x128xf32, #tpu.memory_space<vmem>> -> memref<1x128xf32, #tpu.memory_space<vmem>>
    %85 = tpu.memref_slice %arg7[%c11_i32_45] : memref<16x!tpu.dma_semaphore, #tpu.memory_space<semaphore_mem>> -> memref<1x!tpu.dma_semaphore, #tpu.memory_space<semaphore_mem>>
    %86 = tpu.memref_squeeze %85 : memref<1x!tpu.dma_semaphore, #tpu.memory_space<semaphore_mem>> -> memref<!tpu.dma_semaphore, #tpu.memory_space<semaphore_mem>>
    tpu.enqueue_dma source(%83 : memref<1x128xf32, #tpu.memory_space<any>>) target(%84 : memref<1x128xf32, #tpu.memory_space<vmem>>) target_semaphore(%86 : memref<!tpu.dma_semaphore, #tpu.memory_space<semaphore_mem>>)
    %c12_i32 = arith.constant 12 : i32
    %87 = arith.addi %2, %c12_i32 : i32
    %88 = arith.index_cast %87 : i32 to index
    %89 = memref.load %arg2[%88] : memref<32xi32, #tpu.memory_space<smem>>
    %c12_i32_49 = arith.constant 12 : i32
    %c0_i32_50 = arith.constant 0 : i32
    %90 = tpu.memref_slice %arg3[%89, %c0_i32_50] : memref<64x128xf32, #tpu.memory_space<any>> -> memref<1x128xf32, #tpu.memory_space<any>>
    %c12_i32_51 = arith.constant 12 : i32
    %c0_i32_52 = arith.constant 0 : i32
    %91 = tpu.memref_slice %arg6[%c12_i32_51, %c0_i32_52] : memref<16x128xf32, #tpu.memory_space<vmem>> -> memref<1x128xf32, #tpu.memory_space<vmem>>
    %92 = tpu.memref_slice %arg7[%c12_i32_49] : memref<16x!tpu.dma_semaphore, #tpu.memory_space<semaphore_mem>> -> memref<1x!tpu.dma_semaphore, #tpu.memory_space<semaphore_mem>>
    %93 = tpu.memref_squeeze %92 : memref<1x!tpu.dma_semaphore, #tpu.memory_space<semaphore_mem>> -> memref<!tpu.dma_semaphore, #tpu.memory_space<semaphore_mem>>
    tpu.enqueue_dma source(%90 : memref<1x128xf32, #tpu.memory_space<any>>) target(%91 : memref<1x128xf32, #tpu.memory_space<vmem>>) target_semaphore(%93 : memref<!tpu.dma_semaphore, #tpu.memory_space<semaphore_mem>>)
    %c13_i32 = arith.constant 13 : i32
    %94 = arith.addi %2, %c13_i32 : i32
    %95 = arith.index_cast %94 : i32 to index
    %96 = memref.load %arg2[%95] : memref<32xi32, #tpu.memory_space<smem>>
    %c13_i32_53 = arith.constant 13 : i32
    %c0_i32_54 = arith.constant 0 : i32
    %97 = tpu.memref_slice %arg3[%96, %c0_i32_54] : memref<64x128xf32, #tpu.memory_space<any>> -> memref<1x128xf32, #tpu.memory_space<any>>
    %c13_i32_55 = arith.constant 13 : i32
    %c0_i32_56 = arith.constant 0 : i32
    %98 = tpu.memref_slice %arg6[%c13_i32_55, %c0_i32_56] : memref<16x128xf32, #tpu.memory_space<vmem>> -> memref<1x128xf32, #tpu.memory_space<vmem>>
    %99 = tpu.memref_slice %arg7[%c13_i32_53] : memref<16x!tpu.dma_semaphore, #tpu.memory_space<semaphore_mem>> -> memref<1x!tpu.dma_semaphore, #tpu.memory_space<semaphore_mem>>
    %100 = tpu.memref_squeeze %99 : memref<1x!tpu.dma_semaphore, #tpu.memory_space<semaphore_mem>> -> memref<!tpu.dma_semaphore, #tpu.memory_space<semaphore_mem>>
    tpu.enqueue_dma source(%97 : memref<1x128xf32, #tpu.memory_space<any>>) target(%98 : memref<1x128xf32, #tpu.memory_space<vmem>>) target_semaphore(%100 : memref<!tpu.dma_semaphore, #tpu.memory_space<semaphore_mem>>)
    %c14_i32 = arith.constant 14 : i32
    %101 = arith.addi %2, %c14_i32 : i32
    %102 = arith.index_cast %101 : i32 to index
    %103 = memref.load %arg2[%102] : memref<32xi32, #tpu.memory_space<smem>>
    %c14_i32_57 = arith.constant 14 : i32
    %c0_i32_58 = arith.constant 0 : i32
    %104 = tpu.memref_slice %arg3[%103, %c0_i32_58] : memref<64x128xf32, #tpu.memory_space<any>> -> memref<1x128xf32, #tpu.memory_space<any>>
    %c14_i32_59 = arith.constant 14 : i32
    %c0_i32_60 = arith.constant 0 : i32
    %105 = tpu.memref_slice %arg6[%c14_i32_59, %c0_i32_60] : memref<16x128xf32, #tpu.memory_space<vmem>> -> memref<1x128xf32, #tpu.memory_space<vmem>>
    %106 = tpu.memref_slice %arg7[%c14_i32_57] : memref<16x!tpu.dma_semaphore, #tpu.memory_space<semaphore_mem>> -> memref<1x!tpu.dma_semaphore, #tpu.memory_space<semaphore_mem>>
    %107 = tpu.memref_squeeze %106 : memref<1x!tpu.dma_semaphore, #tpu.memory_space<semaphore_mem>> -> memref<!tpu.dma_semaphore, #tpu.memory_space<semaphore_mem>>
    tpu.enqueue_dma source(%104 : memref<1x128xf32, #tpu.memory_space<any>>) target(%105 : memref<1x128xf32, #tpu.memory_space<vmem>>) target_semaphore(%107 : memref<!tpu.dma_semaphore, #tpu.memory_space<semaphore_mem>>)
    %c15_i32 = arith.constant 15 : i32
    %108 = arith.addi %2, %c15_i32 : i32
    %109 = arith.index_cast %108 : i32 to index
    %110 = memref.load %arg2[%109] : memref<32xi32, #tpu.memory_space<smem>>
    %c15_i32_61 = arith.constant 15 : i32
    %c0_i32_62 = arith.constant 0 : i32
    %111 = tpu.memref_slice %arg3[%110, %c0_i32_62] : memref<64x128xf32, #tpu.memory_space<any>> -> memref<1x128xf32, #tpu.memory_space<any>>
    %c15_i32_63 = arith.constant 15 : i32
    %c0_i32_64 = arith.constant 0 : i32
    %112 = tpu.memref_slice %arg6[%c15_i32_63, %c0_i32_64] : memref<16x128xf32, #tpu.memory_space<vmem>> -> memref<1x128xf32, #tpu.memory_space<vmem>>
    %113 = tpu.memref_slice %arg7[%c15_i32_61] : memref<16x!tpu.dma_semaphore, #tpu.memory_space<semaphore_mem>> -> memref<1x!tpu.dma_semaphore, #tpu.memory_space<semaphore_mem>>
    %114 = tpu.memref_squeeze %113 : memref<1x!tpu.dma_semaphore, #tpu.memory_space<semaphore_mem>> -> memref<!tpu.dma_semaphore, #tpu.memory_space<semaphore_mem>>
    tpu.enqueue_dma source(%111 : memref<1x128xf32, #tpu.memory_space<any>>) target(%112 : memref<1x128xf32, #tpu.memory_space<vmem>>) target_semaphore(%114 : memref<!tpu.dma_semaphore, #tpu.memory_space<semaphore_mem>>)
    %c0_i32_65 = arith.constant 0 : i32
    %c0_i32_66 = arith.constant 0 : i32
    %115 = tpu.memref_slice %arg3[%5, %c0_i32_66] : memref<64x128xf32, #tpu.memory_space<any>> -> memref<1x128xf32, #tpu.memory_space<any>>
    %c0_i32_67 = arith.constant 0 : i32
    %c0_i32_68 = arith.constant 0 : i32
    %116 = tpu.memref_slice %arg6[%c0_i32_67, %c0_i32_68] : memref<16x128xf32, #tpu.memory_space<vmem>> -> memref<1x128xf32, #tpu.memory_space<vmem>>
    %117 = tpu.memref_slice %arg7[%c0_i32_65] : memref<16x!tpu.dma_semaphore, #tpu.memory_space<semaphore_mem>> -> memref<1x!tpu.dma_semaphore, #tpu.memory_space<semaphore_mem>>
    %118 = tpu.memref_squeeze %117 : memref<1x!tpu.dma_semaphore, #tpu.memory_space<semaphore_mem>> -> memref<!tpu.dma_semaphore, #tpu.memory_space<semaphore_mem>>
    tpu.wait_dma2 semaphore(%118 : memref<!tpu.dma_semaphore, #tpu.memory_space<semaphore_mem>>) src(%115 : memref<1x128xf32, #tpu.memory_space<any>>) dst(%116 : memref<1x128xf32, #tpu.memory_space<vmem>>)
    %c1_i32_69 = arith.constant 1 : i32
    %c0_i32_70 = arith.constant 0 : i32
    %119 = tpu.memref_slice %arg3[%12, %c0_i32_70] : memref<64x128xf32, #tpu.memory_space<any>> -> memref<1x128xf32, #tpu.memory_space<any>>
    %c1_i32_71 = arith.constant 1 : i32
    %c0_i32_72 = arith.constant 0 : i32
    %120 = tpu.memref_slice %arg6[%c1_i32_71, %c0_i32_72] : memref<16x128xf32, #tpu.memory_space<vmem>> -> memref<1x128xf32, #tpu.memory_space<vmem>>
    %121 = tpu.memref_slice %arg7[%c1_i32_69] : memref<16x!tpu.dma_semaphore, #tpu.memory_space<semaphore_mem>> -> memref<1x!tpu.dma_semaphore, #tpu.memory_space<semaphore_mem>>
    %122 = tpu.memref_squeeze %121 : memref<1x!tpu.dma_semaphore, #tpu.memory_space<semaphore_mem>> -> memref<!tpu.dma_semaphore, #tpu.memory_space<semaphore_mem>>
    tpu.wait_dma2 semaphore(%122 : memref<!tpu.dma_semaphore, #tpu.memory_space<semaphore_mem>>) src(%119 : memref<1x128xf32, #tpu.memory_space<any>>) dst(%120 : memref<1x128xf32, #tpu.memory_space<vmem>>)
    %c2_i32_73 = arith.constant 2 : i32
    %c0_i32_74 = arith.constant 0 : i32
    %123 = tpu.memref_slice %arg3[%19, %c0_i32_74] : memref<64x128xf32, #tpu.memory_space<any>> -> memref<1x128xf32, #tpu.memory_space<any>>
    %c2_i32_75 = arith.constant 2 : i32
    %c0_i32_76 = arith.constant 0 : i32
    %124 = tpu.memref_slice %arg6[%c2_i32_75, %c0_i32_76] : memref<16x128xf32, #tpu.memory_space<vmem>> -> memref<1x128xf32, #tpu.memory_space<vmem>>
    %125 = tpu.memref_slice %arg7[%c2_i32_73] : memref<16x!tpu.dma_semaphore, #tpu.memory_space<semaphore_mem>> -> memref<1x!tpu.dma_semaphore, #tpu.memory_space<semaphore_mem>>
    %126 = tpu.memref_squeeze %125 : memref<1x!tpu.dma_semaphore, #tpu.memory_space<semaphore_mem>> -> memref<!tpu.dma_semaphore, #tpu.memory_space<semaphore_mem>>
    tpu.wait_dma2 semaphore(%126 : memref<!tpu.dma_semaphore, #tpu.memory_space<semaphore_mem>>) src(%123 : memref<1x128xf32, #tpu.memory_space<any>>) dst(%124 : memref<1x128xf32, #tpu.memory_space<vmem>>)
    %c3_i32_77 = arith.constant 3 : i32
    %c0_i32_78 = arith.constant 0 : i32
    %127 = tpu.memref_slice %arg3[%26, %c0_i32_78] : memref<64x128xf32, #tpu.memory_space<any>> -> memref<1x128xf32, #tpu.memory_space<any>>
    %c3_i32_79 = arith.constant 3 : i32
    %c0_i32_80 = arith.constant 0 : i32
    %128 = tpu.memref_slice %arg6[%c3_i32_79, %c0_i32_80] : memref<16x128xf32, #tpu.memory_space<vmem>> -> memref<1x128xf32, #tpu.memory_space<vmem>>
    %129 = tpu.memref_slice %arg7[%c3_i32_77] : memref<16x!tpu.dma_semaphore, #tpu.memory_space<semaphore_mem>> -> memref<1x!tpu.dma_semaphore, #tpu.memory_space<semaphore_mem>>
    %130 = tpu.memref_squeeze %129 : memref<1x!tpu.dma_semaphore, #tpu.memory_space<semaphore_mem>> -> memref<!tpu.dma_semaphore, #tpu.memory_space<semaphore_mem>>
    tpu.wait_dma2 semaphore(%130 : memref<!tpu.dma_semaphore, #tpu.memory_space<semaphore_mem>>) src(%127 : memref<1x128xf32, #tpu.memory_space<any>>) dst(%128 : memref<1x128xf32, #tpu.memory_space<vmem>>)
    %c4_i32_81 = arith.constant 4 : i32
    %c0_i32_82 = arith.constant 0 : i32
    %131 = tpu.memref_slice %arg3[%33, %c0_i32_82] : memref<64x128xf32, #tpu.memory_space<any>> -> memref<1x128xf32, #tpu.memory_space<any>>
    %c4_i32_83 = arith.constant 4 : i32
    %c0_i32_84 = arith.constant 0 : i32
    %132 = tpu.memref_slice %arg6[%c4_i32_83, %c0_i32_84] : memref<16x128xf32, #tpu.memory_space<vmem>> -> memref<1x128xf32, #tpu.memory_space<vmem>>
    %133 = tpu.memref_slice %arg7[%c4_i32_81] : memref<16x!tpu.dma_semaphore, #tpu.memory_space<semaphore_mem>> -> memref<1x!tpu.dma_semaphore, #tpu.memory_space<semaphore_mem>>
    %134 = tpu.memref_squeeze %133 : memref<1x!tpu.dma_semaphore, #tpu.memory_space<semaphore_mem>> -> memref<!tpu.dma_semaphore, #tpu.memory_space<semaphore_mem>>
    tpu.wait_dma2 semaphore(%134 : memref<!tpu.dma_semaphore, #tpu.memory_space<semaphore_mem>>) src(%131 : memref<1x128xf32, #tpu.memory_space<any>>) dst(%132 : memref<1x128xf32, #tpu.memory_space<vmem>>)
    %c5_i32_85 = arith.constant 5 : i32
    %c0_i32_86 = arith.constant 0 : i32
    %135 = tpu.memref_slice %arg3[%40, %c0_i32_86] : memref<64x128xf32, #tpu.memory_space<any>> -> memref<1x128xf32, #tpu.memory_space<any>>
    %c5_i32_87 = arith.constant 5 : i32
    %c0_i32_88 = arith.constant 0 : i32
    %136 = tpu.memref_slice %arg6[%c5_i32_87, %c0_i32_88] : memref<16x128xf32, #tpu.memory_space<vmem>> -> memref<1x128xf32, #tpu.memory_space<vmem>>
    %137 = tpu.memref_slice %arg7[%c5_i32_85] : memref<16x!tpu.dma_semaphore, #tpu.memory_space<semaphore_mem>> -> memref<1x!tpu.dma_semaphore, #tpu.memory_space<semaphore_mem>>
    %138 = tpu.memref_squeeze %137 : memref<1x!tpu.dma_semaphore, #tpu.memory_space<semaphore_mem>> -> memref<!tpu.dma_semaphore, #tpu.memory_space<semaphore_mem>>
    tpu.wait_dma2 semaphore(%138 : memref<!tpu.dma_semaphore, #tpu.memory_space<semaphore_mem>>) src(%135 : memref<1x128xf32, #tpu.memory_space<any>>) dst(%136 : memref<1x128xf32, #tpu.memory_space<vmem>>)
    %c6_i32_89 = arith.constant 6 : i32
    %c0_i32_90 = arith.constant 0 : i32
    %139 = tpu.memref_slice %arg3[%47, %c0_i32_90] : memref<64x128xf32, #tpu.memory_space<any>> -> memref<1x128xf32, #tpu.memory_space<any>>
    %c6_i32_91 = arith.constant 6 : i32
    %c0_i32_92 = arith.constant 0 : i32
    %140 = tpu.memref_slice %arg6[%c6_i32_91, %c0_i32_92] : memref<16x128xf32, #tpu.memory_space<vmem>> -> memref<1x128xf32, #tpu.memory_space<vmem>>
    %141 = tpu.memref_slice %arg7[%c6_i32_89] : memref<16x!tpu.dma_semaphore, #tpu.memory_space<semaphore_mem>> -> memref<1x!tpu.dma_semaphore, #tpu.memory_space<semaphore_mem>>
    %142 = tpu.memref_squeeze %141 : memref<1x!tpu.dma_semaphore, #tpu.memory_space<semaphore_mem>> -> memref<!tpu.dma_semaphore, #tpu.memory_space<semaphore_mem>>
    tpu.wait_dma2 semaphore(%142 : memref<!tpu.dma_semaphore, #tpu.memory_space<semaphore_mem>>) src(%139 : memref<1x128xf32, #tpu.memory_space<any>>) dst(%140 : memref<1x128xf32, #tpu.memory_space<vmem>>)
    %c7_i32_93 = arith.constant 7 : i32
    %c0_i32_94 = arith.constant 0 : i32
    %143 = tpu.memref_slice %arg3[%54, %c0_i32_94] : memref<64x128xf32, #tpu.memory_space<any>> -> memref<1x128xf32, #tpu.memory_space<any>>
    %c7_i32_95 = arith.constant 7 : i32
    %c0_i32_96 = arith.constant 0 : i32
    %144 = tpu.memref_slice %arg6[%c7_i32_95, %c0_i32_96] : memref<16x128xf32, #tpu.memory_space<vmem>> -> memref<1x128xf32, #tpu.memory_space<vmem>>
    %145 = tpu.memref_slice %arg7[%c7_i32_93] : memref<16x!tpu.dma_semaphore, #tpu.memory_space<semaphore_mem>> -> memref<1x!tpu.dma_semaphore, #tpu.memory_space<semaphore_mem>>
    %146 = tpu.memref_squeeze %145 : memref<1x!tpu.dma_semaphore, #tpu.memory_space<semaphore_mem>> -> memref<!tpu.dma_semaphore, #tpu.memory_space<semaphore_mem>>
    tpu.wait_dma2 semaphore(%146 : memref<!tpu.dma_semaphore, #tpu.memory_space<semaphore_mem>>) src(%143 : memref<1x128xf32, #tpu.memory_space<any>>) dst(%144 : memref<1x128xf32, #tpu.memory_space<vmem>>)
    %c8_i32_97 = arith.constant 8 : i32
    %c0_i32_98 = arith.constant 0 : i32
    %147 = tpu.memref_slice %arg3[%61, %c0_i32_98] : memref<64x128xf32, #tpu.memory_space<any>> -> memref<1x128xf32, #tpu.memory_space<any>>
    %c8_i32_99 = arith.constant 8 : i32
    %c0_i32_100 = arith.constant 0 : i32
    %148 = tpu.memref_slice %arg6[%c8_i32_99, %c0_i32_100] : memref<16x128xf32, #tpu.memory_space<vmem>> -> memref<1x128xf32, #tpu.memory_space<vmem>>
    %149 = tpu.memref_slice %arg7[%c8_i32_97] : memref<16x!tpu.dma_semaphore, #tpu.memory_space<semaphore_mem>> -> memref<1x!tpu.dma_semaphore, #tpu.memory_space<semaphore_mem>>
    %150 = tpu.memref_squeeze %149 : memref<1x!tpu.dma_semaphore, #tpu.memory_space<semaphore_mem>> -> memref<!tpu.dma_semaphore, #tpu.memory_space<semaphore_mem>>
    tpu.wait_dma2 semaphore(%150 : memref<!tpu.dma_semaphore, #tpu.memory_space<semaphore_mem>>) src(%147 : memref<1x128xf32, #tpu.memory_space<any>>) dst(%148 : memref<1x128xf32, #tpu.memory_space<vmem>>)
    %c9_i32_101 = arith.constant 9 : i32
    %c0_i32_102 = arith.constant 0 : i32
    %151 = tpu.memref_slice %arg3[%68, %c0_i32_102] : memref<64x128xf32, #tpu.memory_space<any>> -> memref<1x128xf32, #tpu.memory_space<any>>
    %c9_i32_103 = arith.constant 9 : i32
    %c0_i32_104 = arith.constant 0 : i32
    %152 = tpu.memref_slice %arg6[%c9_i32_103, %c0_i32_104] : memref<16x128xf32, #tpu.memory_space<vmem>> -> memref<1x128xf32, #tpu.memory_space<vmem>>
    %153 = tpu.memref_slice %arg7[%c9_i32_101] : memref<16x!tpu.dma_semaphore, #tpu.memory_space<semaphore_mem>> -> memref<1x!tpu.dma_semaphore, #tpu.memory_space<semaphore_mem>>
    %154 = tpu.memref_squeeze %153 : memref<1x!tpu.dma_semaphore, #tpu.memory_space<semaphore_mem>> -> memref<!tpu.dma_semaphore, #tpu.memory_space<semaphore_mem>>
    tpu.wait_dma2 semaphore(%154 : memref<!tpu.dma_semaphore, #tpu.memory_space<semaphore_mem>>) src(%151 : memref<1x128xf32, #tpu.memory_space<any>>) dst(%152 : memref<1x128xf32, #tpu.memory_space<vmem>>)
    %c10_i32_105 = arith.constant 10 : i32
    %c0_i32_106 = arith.constant 0 : i32
    %155 = tpu.memref_slice %arg3[%75, %c0_i32_106] : memref<64x128xf32, #tpu.memory_space<any>> -> memref<1x128xf32, #tpu.memory_space<any>>
    %c10_i32_107 = arith.constant 10 : i32
    %c0_i32_108 = arith.constant 0 : i32
    %156 = tpu.memref_slice %arg6[%c10_i32_107, %c0_i32_108] : memref<16x128xf32, #tpu.memory_space<vmem>> -> memref<1x128xf32, #tpu.memory_space<vmem>>
    %157 = tpu.memref_slice %arg7[%c10_i32_105] : memref<16x!tpu.dma_semaphore, #tpu.memory_space<semaphore_mem>> -> memref<1x!tpu.dma_semaphore, #tpu.memory_space<semaphore_mem>>
    %158 = tpu.memref_squeeze %157 : memref<1x!tpu.dma_semaphore, #tpu.memory_space<semaphore_mem>> -> memref<!tpu.dma_semaphore, #tpu.memory_space<semaphore_mem>>
    tpu.wait_dma2 semaphore(%158 : memref<!tpu.dma_semaphore, #tpu.memory_space<semaphore_mem>>) src(%155 : memref<1x128xf32, #tpu.memory_space<any>>) dst(%156 : memref<1x128xf32, #tpu.memory_space<vmem>>)
    %c11_i32_109 = arith.constant 11 : i32
    %c0_i32_110 = arith.constant 0 : i32
    %159 = tpu.memref_slice %arg3[%82, %c0_i32_110] : memref<64x128xf32, #tpu.memory_space<any>> -> memref<1x128xf32, #tpu.memory_space<any>>
    %c11_i32_111 = arith.constant 11 : i32
    %c0_i32_112 = arith.constant 0 : i32
    %160 = tpu.memref_slice %arg6[%c11_i32_111, %c0_i32_112] : memref<16x128xf32, #tpu.memory_space<vmem>> -> memref<1x128xf32, #tpu.memory_space<vmem>>
    %161 = tpu.memref_slice %arg7[%c11_i32_109] : memref<16x!tpu.dma_semaphore, #tpu.memory_space<semaphore_mem>> -> memref<1x!tpu.dma_semaphore, #tpu.memory_space<semaphore_mem>>
    %162 = tpu.memref_squeeze %161 : memref<1x!tpu.dma_semaphore, #tpu.memory_space<semaphore_mem>> -> memref<!tpu.dma_semaphore, #tpu.memory_space<semaphore_mem>>
    tpu.wait_dma2 semaphore(%162 : memref<!tpu.dma_semaphore, #tpu.memory_space<semaphore_mem>>) src(%159 : memref<1x128xf32, #tpu.memory_space<any>>) dst(%160 : memref<1x128xf32, #tpu.memory_space<vmem>>)
    %c12_i32_113 = arith.constant 12 : i32
    %c0_i32_114 = arith.constant 0 : i32
    %163 = tpu.memref_slice %arg3[%89, %c0_i32_114] : memref<64x128xf32, #tpu.memory_space<any>> -> memref<1x128xf32, #tpu.memory_space<any>>
    %c12_i32_115 = arith.constant 12 : i32
    %c0_i32_116 = arith.constant 0 : i32
    %164 = tpu.memref_slice %arg6[%c12_i32_115, %c0_i32_116] : memref<16x128xf32, #tpu.memory_space<vmem>> -> memref<1x128xf32, #tpu.memory_space<vmem>>
    %165 = tpu.memref_slice %arg7[%c12_i32_113] : memref<16x!tpu.dma_semaphore, #tpu.memory_space<semaphore_mem>> -> memref<1x!tpu.dma_semaphore, #tpu.memory_space<semaphore_mem>>
    %166 = tpu.memref_squeeze %165 : memref<1x!tpu.dma_semaphore, #tpu.memory_space<semaphore_mem>> -> memref<!tpu.dma_semaphore, #tpu.memory_space<semaphore_mem>>
    tpu.wait_dma2 semaphore(%166 : memref<!tpu.dma_semaphore, #tpu.memory_space<semaphore_mem>>) src(%163 : memref<1x128xf32, #tpu.memory_space<any>>) dst(%164 : memref<1x128xf32, #tpu.memory_space<vmem>>)
    %c13_i32_117 = arith.constant 13 : i32
    %c0_i32_118 = arith.constant 0 : i32
    %167 = tpu.memref_slice %arg3[%96, %c0_i32_118] : memref<64x128xf32, #tpu.memory_space<any>> -> memref<1x128xf32, #tpu.memory_space<any>>
    %c13_i32_119 = arith.constant 13 : i32
    %c0_i32_120 = arith.constant 0 : i32
    %168 = tpu.memref_slice %arg6[%c13_i32_119, %c0_i32_120] : memref<16x128xf32, #tpu.memory_space<vmem>> -> memref<1x128xf32, #tpu.memory_space<vmem>>
    %169 = tpu.memref_slice %arg7[%c13_i32_117] : memref<16x!tpu.dma_semaphore, #tpu.memory_space<semaphore_mem>> -> memref<1x!tpu.dma_semaphore, #tpu.memory_space<semaphore_mem>>
    %170 = tpu.memref_squeeze %169 : memref<1x!tpu.dma_semaphore, #tpu.memory_space<semaphore_mem>> -> memref<!tpu.dma_semaphore, #tpu.memory_space<semaphore_mem>>
    tpu.wait_dma2 semaphore(%170 : memref<!tpu.dma_semaphore, #tpu.memory_space<semaphore_mem>>) src(%167 : memref<1x128xf32, #tpu.memory_space<any>>) dst(%168 : memref<1x128xf32, #tpu.memory_space<vmem>>)
    %c14_i32_121 = arith.constant 14 : i32
    %c0_i32_122 = arith.constant 0 : i32
    %171 = tpu.memref_slice %arg3[%103, %c0_i32_122] : memref<64x128xf32, #tpu.memory_space<any>> -> memref<1x128xf32, #tpu.memory_space<any>>
    %c14_i32_123 = arith.constant 14 : i32
    %c0_i32_124 = arith.constant 0 : i32
    %172 = tpu.memref_slice %arg6[%c14_i32_123, %c0_i32_124] : memref<16x128xf32, #tpu.memory_space<vmem>> -> memref<1x128xf32, #tpu.memory_space<vmem>>
    %173 = tpu.memref_slice %arg7[%c14_i32_121] : memref<16x!tpu.dma_semaphore, #tpu.memory_space<semaphore_mem>> -> memref<1x!tpu.dma_semaphore, #tpu.memory_space<semaphore_mem>>
    %174 = tpu.memref_squeeze %173 : memref<1x!tpu.dma_semaphore, #tpu.memory_space<semaphore_mem>> -> memref<!tpu.dma_semaphore, #tpu.memory_space<semaphore_mem>>
    tpu.wait_dma2 semaphore(%174 : memref<!tpu.dma_semaphore, #tpu.memory_space<semaphore_mem>>) src(%171 : memref<1x128xf32, #tpu.memory_space<any>>) dst(%172 : memref<1x128xf32, #tpu.memory_space<vmem>>)
    %c15_i32_125 = arith.constant 15 : i32
    %c0_i32_126 = arith.constant 0 : i32
    %175 = tpu.memref_slice %arg3[%110, %c0_i32_126] : memref<64x128xf32, #tpu.memory_space<any>> -> memref<1x128xf32, #tpu.memory_space<any>>
    %c15_i32_127 = arith.constant 15 : i32
    %c0_i32_128 = arith.constant 0 : i32
    %176 = tpu.memref_slice %arg6[%c15_i32_127, %c0_i32_128] : memref<16x128xf32, #tpu.memory_space<vmem>> -> memref<1x128xf32, #tpu.memory_space<vmem>>
    %177 = tpu.memref_slice %arg7[%c15_i32_125] : memref<16x!tpu.dma_semaphore, #tpu.memory_space<semaphore_mem>> -> memref<1x!tpu.dma_semaphore, #tpu.memory_space<semaphore_mem>>
    %178 = tpu.memref_squeeze %177 : memref<1x!tpu.dma_semaphore, #tpu.memory_space<semaphore_mem>> -> memref<!tpu.dma_semaphore, #tpu.memory_space<semaphore_mem>>
    tpu.wait_dma2 semaphore(%178 : memref<!tpu.dma_semaphore, #tpu.memory_space<semaphore_mem>>) src(%175 : memref<1x128xf32, #tpu.memory_space<any>>) dst(%176 : memref<1x128xf32, #tpu.memory_space<vmem>>)
    %c0 = arith.constant 0 : index
    %c0_129 = arith.constant 0 : index
    %179 = vector.load %arg6[%c0, %c0_129] : memref<16x128xf32, #tpu.memory_space<vmem>>, vector<16x128xf32>
    %c0_130 = arith.constant 0 : index
    %c0_131 = arith.constant 0 : index
    %180 = vector.load %arg4[%c0_130, %c0_131] : memref<16x128xf32, #tpu.memory_space<vmem>>, vector<16x128xf32>
    %cst = arith.constant 11.3137083 : f32
    %181 = vector.broadcast %cst : f32 to vector<16x128xf32>
    %182 = arith.mulf %179, %181 : vector<16x128xf32>
    %183 = arith.addf %182, %180 : vector<16x128xf32>
    %c0_132 = arith.constant 0 : index
    %c0_133 = arith.constant 0 : index
    %c0_134 = arith.constant 0 : index
    %184 = vector.load %arg5[%c0_132, %c0_133, %c0_134] : memref<1x16x128xf32, #tpu.memory_space<vmem>>, vector<1x16x128xf32>
    %185 = vector.shape_cast %184 : vector<1x16x128xf32> to vector<16x128xf32>
    %186 = vector.shape_cast %183 : vector<16x128xf32> to vector<1x16x128xf32>
    tpu.vector_store %arg5[%c0_132, %c0_133, %c0_134], %186 {strides = array<i32>} : memref<1x16x128xf32, #tpu.memory_space<vmem>>, vector<1x16x128xf32>,
    return
  }
  func.func @transform_1(%arg0: i32, %arg1: i32, %arg2: memref<32xi32, #tpu.memory_space<smem>>) -> (i32, i32) {
    %c0_i32 = arith.constant 0 : i32
    %c0_i32_0 = arith.constant 0 : i32
    return %arg1, %c0_i32 : i32, i32
  }
  func.func @transform_2(%arg0: i32, %arg1: i32, %arg2: memref<32xi32, #tpu.memory_space<smem>>) -> (i32, i32, i32) {
    %c0_i32 = arith.constant 0 : i32
    %c0_i32_0 = arith.constant 0 : i32
    return %arg0, %arg1, %c0_i32 : i32, i32, i32
  }
}

</mosaic_0001>

<llo_original>
// kernel: tpu_custom_call.1
$region0: #{tpu_custom_call.1}
  #allocation0 [shape = 'u32[]', space=smem, size = 0x4, offset = 0x4, fixed_abs, tag = 'smem constant byte address 0x4 - core index']
  #allocation1 [shape = 'u32[144,128]{1,0:T(1,128)}', space=vmem, size = 0x12000, scoped, tag = 'internal scratch']
  #allocation2 [shape = 'f32[16,128]{1,0:T(8,128)}', space=vmem, size = 0x2000, scoped, tag = 'scratch operand']
  #allocation3 [shape = 's32[16]{0}', space=sflag, size = 0x40, scoped, tag = 'scratch operand']
  #allocation4 [shape = 's32[1]{0}', space=sflag, size = 0x4, scoped, tag = 'scoped memory for tpu_custom_call.1']
  #allocation5 [shape = 'u8[512]{0}', space=smem, size = 0x200, scoped, tag = 'prefetched SMEM operand 0']
  #allocation10 [shape = 's32[]', space=sflag, size = 0x4, offset = 0, fixed_abs, tag = 'sflag constant byte address 0x0 - dummy sync flag']
  #allocation11 [shape = 's32[]', space=sflag, size = 0x4, offset = 0, fixed_abs, tag = 'sflag constant byte address 0x0 - dummy sync flag']
  #allocation12 [shape = 'u32[]', space=smem, size = 0x4, offset = 0x44, fixed_abs, tag = 'smem constant byte address 0x44 - assertion arg 0']
  #allocation13 [shape = 'u32[]', space=smem, size = 0x4, offset = 0x48, fixed_abs, tag = 'smem constant byte address 0x48 - assertion arg 1']
  #allocation14 [shape = 's32[]', space=sflag, size = 0x4, offset = 0, fixed_abs, tag = 'sflag constant byte address 0x0 - dummy sync flag']
  #allocation15 [shape = 's32[]', space=sflag, size = 0x4, offset = 0, fixed_abs, tag = 'sflag constant byte address 0x0 - dummy sync flag']
  #allocation16 [shape = 's32[]', space=sflag, size = 0x4, offset = 0, fixed_abs, tag = 'sflag constant byte address 0x0 - dummy sync flag']
  #allocation17 [shape = 's32[]', space=sflag, size = 0x4, offset = 0, fixed_abs, tag = 'sflag constant byte address 0x0 - dummy sync flag']
  #allocation18 [shape = 's32[]', space=sflag, size = 0x4, offset = 0, fixed_abs, tag = 'sflag constant byte address 0x0 - dummy sync flag']
  #allocation19 [shape = 's32[]', space=sflag, size = 0x4, offset = 0, fixed_abs, tag = 'sflag constant byte address 0x0 - dummy sync flag']
  #allocation20 [shape = 's32[]', space=sflag, size = 0x4, offset = 0, fixed_abs, tag = 'sflag constant byte address 0x0 - dummy sync flag']
  #allocation21 [shape = 's32[]', space=sflag, size = 0x4, offset = 0, fixed_abs, tag = 'sflag constant byte address 0x0 - dummy sync flag']
  #allocation22 [shape = 's32[]', space=sflag, size = 0x4, offset = 0, fixed_abs, tag = 'sflag constant byte address 0x0 - dummy sync flag']
  #allocation23 [shape = 's32[]', space=sflag, size = 0x4, offset = 0, fixed_abs, tag = 'sflag constant byte address 0x0 - dummy sync flag']
  #allocation24 [shape = 's32[]', space=sflag, size = 0x4, offset = 0, fixed_abs, tag = 'sflag constant byte address 0x0 - dummy sync flag']
  #allocation25 [shape = 's32[]', space=sflag, size = 0x4, offset = 0, fixed_abs, tag = 'sflag constant byte address 0x0 - dummy sync flag']
  #allocation26 [shape = 's32[]', space=sflag, size = 0x4, offset = 0, fixed_abs, tag = 'sflag constant byte address 0x0 - dummy sync flag']
  #allocation27 [shape = 's32[]', space=sflag, size = 0x4, offset = 0, fixed_abs, tag = 'sflag constant byte address 0x0 - dummy sync flag']
  #allocation28 [shape = 's32[]', space=sflag, size = 0x4, offset = 0, fixed_abs, tag = 'sflag constant byte address 0x0 - dummy sync flag']
  #allocation29 [shape = 's32[]', space=sflag, size = 0x4, offset = 0, fixed_abs, tag = 'sflag constant byte address 0x0 - dummy sync flag']
  #allocation30 [shape = 's32[]', space=sflag, size = 0x4, offset = 0, fixed_abs, tag = 'sflag constant byte address 0x0 - dummy sync flag']
  #allocation31 [shape = 's32[]', space=sflag, size = 0x4, offset = 0, fixed_abs, tag = 'sflag constant byte address 0x0 - dummy sync flag']
  #allocation32 [shape = 's32[]', space=sflag, size = 0x4, offset = 0, fixed_abs, tag = 'sflag constant byte address 0x0 - dummy sync flag']
  #allocation33 [shape = 's32[]', space=sflag, size = 0x4, offset = 0, fixed_abs, tag = 'sflag constant byte address 0x0 - dummy sync flag']
  #allocation34 [shape = 's32[]', space=sflag, size = 0x4, offset = 0, fixed_abs, tag = 'sflag constant byte address 0x0 - dummy sync flag']
  #allocation35 [shape = 's32[]', space=sflag, size = 0x4, offset = 0, fixed_abs, tag = 'sflag constant byte address 0x0 - dummy sync flag']
  #allocation36 [shape = 's32[]', space=sflag, size = 0x4, offset = 0, fixed_abs, tag = 'sflag constant byte address 0x0 - dummy sync flag']
  #allocation37 [shape = 's32[]', space=sflag, size = 0x4, offset = 0, fixed_abs, tag = 'sflag constant byte address 0x0 - dummy sync flag']
  #allocation38 [shape = 's32[]', space=sflag, size = 0x4, offset = 0, fixed_abs, tag = 'sflag constant byte address 0x0 - dummy sync flag']
  #allocation39 [shape = 's32[]', space=sflag, size = 0x4, offset = 0, fixed_abs, tag = 'sflag constant byte address 0x0 - dummy sync flag']
  #allocation40 [shape = 's32[]', space=sflag, size = 0x4, offset = 0, fixed_abs, tag = 'sflag constant byte address 0x0 - dummy sync flag']
  #allocation41 [shape = 's32[]', space=sflag, size = 0x4, offset = 0, fixed_abs, tag = 'sflag constant byte address 0x0 - dummy sync flag']
  #allocation42 [shape = 's32[]', space=sflag, size = 0x4, offset = 0, fixed_abs, tag = 'sflag constant byte address 0x0 - dummy sync flag']
  #allocation43 [shape = 's32[]', space=sflag, size = 0x4, offset = 0, fixed_abs, tag = 'sflag constant byte address 0x0 - dummy sync flag']
  %s0 = inlined_call_operand.hbm [shape: s32[32], index: 0, kind: input, shape index: {}]
  %s1 = inlined_call_operand.hbm [shape: f32[64,128], index: 1, kind: input, shape index: {}]
  %s2 = inlined_call_operand.hbm [shape: f32[16,128], index: 2, kind: input, shape index: {}]
  %s3 = inlined_call_operand.hbm [shape: f32[2,16,128], index: 3, kind: output, shape index: {}]
  %s4 = sld [smem:[#allocation0]]
  $region105: #{tpu_custom_call.1} parent=0
    _
  %s6 = ssub.s32 1, %s4
  %s7 = scalar_select 0, %s6, %s4
  %9 = dma.hbm_to_smem %s0, 16, [#allocation5], [#allocation4]
  %10 = dma.done [#allocation4], 16
  %11 = sfence
  $region1: #{tpu_custom_call.1} parent=0
    #allocation6 [shape = 'u8[8192]{0}', space=vmem, size = 0x2000, scoped, tag = 'input window, operand 2, single buffered']
    #allocation7 [shape = 's32[2]{0}', space=sflag, size = 0x8, scoped, tag = 'scoped memory for tpu_custom_call.1']
    #allocation8 [shape = 's32[2]{0}', space=sflag, size = 0x8, scoped, tag = 'scoped memory for tpu_custom_call.1']
    #allocation9 [shape = 'u8[16384]{0}', space=vmem, size = 0x4000, scoped, tag = 'output window, operand 0']
    %12 = vsyncpa [#allocation7], 0
    %13 = vsyncpa [#allocation8], 0
    %s14 = scalar_lea.sflag [#allocation8], 1
    %15 = vsyncpa %s14, 0
    loop: start=0, step=1, limit=4
    $region2: #{tpu_custom_call.1} parent=1 // loop_pre_header
      _
    $region3: #{tpu_custom_call.1} parent=1 // loop_header
      %s17 = sphi 0, %s21
      %p18 = scmp.ge.s32.totalorder %s17, 4
      %s24 = sphi 0, %s36
      %s25 = sphi 0, %s32
      %s26 = sphi 0, %s24
      %s27 = sphi 0, %s25
      %s28 = sphi 0, %s26
      %s29 = sphi 0, %s27
      %s39 = sphi 0, %s41
      %s42 = sphi 0, %s39
      %s43 = sphi 0, %s42
      %s59 = sphi 0, %s43
      %s67 = sphi 0, %s69
      %s70 = sphi 0, %s67
      %s71 = sphi 0, %s70
      %s87 = sphi 0, %s71
    $region4: #{tpu_custom_call.1} parent=1 // loop_header_branch
      %20 = sbr.rel (%p18) target = $region8
    $region5: #{tpu_custom_call.1} parent=1 // loop_body
      %s22 = ssub.s32 %s17, 1
      %s23 = ssub.s32 %s17, 2
      %s30 = sadd.s32 1, %s25
      %p31 = scmp.ge.s32.totalorder %s30, 1
      %s32 = scalar_select %p31, 0, %s30
      %s33 = sadd.s32 1, %s24
      %s34 = scalar_select %p31, %s33, %s24
      %p35 = scmp.ge.s32.totalorder %s34, 2
      %s36 = scalar_select %p35, 0, %s34
      %s37 = ssub.s32 %s25, %s32
      %p38 = scmp.eq.s32.totalorder %s37, 0
      %s40 = sadd.s32 %s39, 1
      %s41 = scalar_select %p38, %s39, %s40
      %p44 = pneg %p38
      %p45 = scmp.eq.s32.totalorder %s17, 1
      %p46 = por %p44, %p45
      %p47 = scmp.ne.s32.totalorder %s39, %s42
      %p48 = scmp.eq.s32.totalorder %s17, 0
      %p49 = por %p47, %p48
      %p50 = scmp.ne.s32.totalorder %s39, %s42
      %p51 = scmp.eq.s32.totalorder %s22, 1
      %p52 = por %p50, %p51
      %p53 = scmp.ne.s32.totalorder %s42, %s43
      %p54 = scmp.eq.s32.totalorder %s22, 0
      %p55 = por %p53, %p54
      %p56 = scmp.ne.s32.totalorder %s42, %s43
      %p57 = scmp.eq.s32.totalorder %s23, 1
      %p58 = por %p56, %p57
      %p60 = scmp.ne.s32.totalorder %s43, %s59
      %p61 = scmp.eq.s32.totalorder %s23, 0
      %p62 = por %p60, %p61
      %s63 = ssub.s32 %s24, %s36
      %s64 = ssub.s32 %s25, %s32
      %s65 = sor.u32 %s63, %s64
      %p66 = scmp.eq.s32.totalorder %s65, 0
      %s68 = sadd.s32 %s67, 1
      %s69 = scalar_select %p66, %s67, %s68
      %p72 = pneg %p66
      %p73 = scmp.eq.s32.totalorder %s17, 1
      %p74 = por %p72, %p73
      %p75 = scmp.ne.s32.totalorder %s67, %s70
      %p76 = scmp.eq.s32.totalorder %s17, 0
      %p77 = por %p75, %p76
      %p78 = scmp.ne.s32.totalorder %s67, %s70
      %p79 = scmp.eq.s32.totalorder %s22, 1
      %p80 = por %p78, %p79
      %p81 = scmp.ne.s32.totalorder %s70, %s71
      %p82 = scmp.eq.s32.totalorder %s22, 0
      %p83 = por %p81, %p82
      %p84 = scmp.ne.s32.totalorder %s70, %s71
      %p85 = scmp.eq.s32.totalorder %s23, 1
      %p86 = por %p84, %p85
      %p88 = scmp.ne.s32.totalorder %s71, %s87
      %p89 = scmp.eq.s32.totalorder %s23, 0
      %p90 = por %p88, %p89
      %p91 = scmp.le.s32.totalorder 1, %s17
      %p92 = scmp.lt.s32.totalorder %s17, 3
      %p93 = pnand %p91, %p92
      %p94 = pneg %p93
      // Predicated region
      $region9: #{tpu_custom_call.1} parent=5 // pred_check
        _
      $region10: #{tpu_custom_call.1} parent=5 // pred_check_branch
        %96 = sbr.rel (%p93) target = $region12
      $region11: #{tpu_custom_call.1} parent=5 // pred_region
        %s97 = ssub.s32 %s17, 1
        // Predicated region
        $region13: #{tpu_custom_call.1} parent=11 // pred_check
          %p98 = pneg %p55
        $region14: #{tpu_custom_call.1} parent=11 // pred_check_branch
          %100 = sbr.rel (%p98) target = $region16
        $region15: #{tpu_custom_call.1} parent=11 // pred_region
          %s101 = smul.u32 2, %s27
          %s103 = ssub.s32 256, 256
          %104 = vsyncadd [#allocation7], %s103
          %s105 = smul.addr %s101, 128
          %s106 = scalar_lea.hbm %s2, %s105
          %s107 = sshll.u32 [#allocation6], 4
          %s108 = int_to_ptr.vmem [resolvable:$true] %s107
          %113 = dma.hbm_to_vmem [thread:$0]  %s106, 256, %s108, [#allocation7], 128, 128, 8
        $region16: #{tpu_custom_call.1} parent=11 // pred_fallthru
          _
      $region12: #{tpu_custom_call.1} parent=5 // pred_fallthru
        _
      %p114 = scmp.lt.s32.totalorder %s17, 2
      // Predicated region
      $region17: #{tpu_custom_call.1} parent=5 // pred_check
        %p115 = pneg %p114
      $region18: #{tpu_custom_call.1} parent=5 // pred_check_branch
        %117 = sbr.rel (%p115) target = $region20
      $region19: #{tpu_custom_call.1} parent=5 // pred_region
        _
      $region20: #{tpu_custom_call.1} parent=5 // pred_fallthru
        _
      %p118 = scmp.le.s32.totalorder 1, %s17
      %p119 = scmp.lt.s32.totalorder %s17, 3
      %p120 = pnand %p118, %p119
      %p121 = pneg %p120
      // Predicated region
      $region21: #{tpu_custom_call.1} parent=5 // pred_check
        _
      $region22: #{tpu_custom_call.1} parent=5 // pred_check_branch
        %123 = sbr.rel (%p120) target = $region24
      $region23: #{tpu_custom_call.1} parent=5 // pred_region
        %s124 = ssub.s32 %s17, 1
        // Predicated region
        $region25: #{tpu_custom_call.1} parent=23 // pred_check
          %p125 = pneg %p55
        $region26: #{tpu_custom_call.1} parent=23 // pred_check_branch
          %127 = sbr.rel (%p125) target = $region28
        $region27: #{tpu_custom_call.1} parent=23 // pred_region
          %128 = dma.done [#allocation7], 256
        $region28: #{tpu_custom_call.1} parent=23 // pred_fallthru
          _
        %p129 = pneg %p55
        %p130 = pneg %p52
        %p131 = pneg %p83
        %p132 = pneg %p80
        %s133 = sand.u32 %s70, 1
        %s134 = scalar_lea.sflag [#allocation8], %s133
        %s135 = sand.u32 %s70, 1
        %s136 = smul.addr %s135, 16
        %s137 = scalar_lea.vmem [#allocation9], %s136
        %s138 = smul.u32 2, %s27
        %s139 = smul.u32 2, %s27
        %s140 = smul.u32 %s26, 16
        %s141 = smul.u32 %s27, 16
        %s142 = sadd.s32 %s140, %s141
        %s143 = sld [smem:[#allocation5 + %s142]]
        %s144 = smul.addr %s143, 16
        %s145 = scalar_lea.hbm %s1, %s144
        // Predicated region
        $region29: #{tpu_custom_call.1} parent=23 // pred_check
          _
        $region30: #{tpu_custom_call.1} parent=23 // pred_check_branch
          %147 = sbr.rel target = $region32
        $region31: #{tpu_custom_call.1} parent=23 // pred_region
          %148 = sst [smem:[#allocation12]] [#allocation11]
          %149 = sst [smem:[#allocation13]] [#allocation10]
        $region32: #{tpu_custom_call.1} parent=23 // pred_fallthru
          _
        %151 = shalt.err (0)
        %s153 = sshll.u32 [#allocation2], 4
        %s154 = int_to_ptr.vmem [resolvable:$true] %s153
        %156 = dma.hbm_to_vmem [thread:$0]  %s145, 16, %s154, [#allocation3]
        %s157 = sadd.s32 %s142, 1
        %s158 = sld [smem:[#allocation5 + %s157]]
        %s159 = smul.addr %s158, 16
        %s160 = scalar_lea.hbm %s1, %s159
        %s161 = scalar_lea.vmem [#allocation2], 1
        %s162 = scalar_lea.sflag [#allocation3], 1
        // Predicated region
        $region33: #{tpu_custom_call.1} parent=23 // pred_check
          _
        $region34: #{tpu_custom_call.1} parent=23 // pred_check_branch
          %164 = sbr.rel target = $region36
        $region35: #{tpu_custom_call.1} parent=23 // pred_region
          %165 = sst [smem:[#allocation12]] [#allocation15]
          %166 = sst [smem:[#allocation13]] [#allocation14]
        $region36: #{tpu_custom_call.1} parent=23 // pred_fallthru
          _
        %168 = shalt.err (0)
        %s170 = sshll.u32 %s161, 4
        %s171 = int_to_ptr.vmem [resolvable:$true] %s170
        %173 = dma.hbm_to_vmem [thread:$0]  %s160, 16, %s171, %s162
        %s174 = sadd.s32 %s142, 2
        %s175 = sld [smem:[#allocation5 + %s174]]
        %s176 = smul.addr %s175, 16
        %s177 = scalar_lea.hbm %s1, %s176
        %s178 = scalar_lea.vmem [#allocation2], 2
        %s179 = scalar_lea.sflag [#allocation3], 2
        // Predicated region
        $region37: #{tpu_custom_call.1} parent=23 // pred_check
          _
        $region38: #{tpu_custom_call.1} parent=23 // pred_check_branch
          %181 = sbr.rel target = $region40
        $region39: #{tpu_custom_call.1} parent=23 // pred_region
          %182 = sst [smem:[#allocation12]] [#allocation17]
          %183 = sst [smem:[#allocation13]] [#allocation16]
        $region40: #{tpu_custom_call.1} parent=23 // pred_fallthru
          _
        %185 = shalt.err (0)
        %s187 = sshll.u32 %s178, 4
        %s188 = int_to_ptr.vmem [resolvable:$true] %s187
        %190 = dma.hbm_to_vmem [thread:$0]  %s177, 16, %s188, %s179
        %s191 = sadd.s32 %s142, 3
        %s192 = sld [smem:[#allocation5 + %s191]]
        %s193 = smul.addr %s192, 16
        %s194 = scalar_lea.hbm %s1, %s193
        %s195 = scalar_lea.vmem [#allocation2], 3
        %s196 = scalar_lea.sflag [#allocation3], 3
        // Predicated region
        $region41: #{tpu_custom_call.1} parent=23 // pred_check
          _
        $region42: #{tpu_custom_call.1} parent=23 // pred_check_branch
          %198 = sbr.rel target = $region44
        $region43: #{tpu_custom_call.1} parent=23 // pred_region
          %199 = sst [smem:[#allocation12]] [#allocation19]
          %200 = sst [smem:[#allocation13]] [#allocation18]
        $region44: #{tpu_custom_call.1} parent=23 // pred_fallthru
          _
        %202 = shalt.err (0)
        %s204 = sshll.u32 %s195, 4
        %s205 = int_to_ptr.vmem [resolvable:$true] %s204
        %207 = dma.hbm_to_vmem [thread:$0]  %s194, 16, %s205, %s196
        %s208 = sadd.s32 %s142, 4
        %s209 = sld [smem:[#allocation5 + %s208]]
        %s210 = smul.addr %s209, 16
        %s211 = scalar_lea.hbm %s1, %s210
        %s212 = scalar_lea.vmem [#allocation2], 4
        %s213 = scalar_lea.sflag [#allocation3], 4
        // Predicated region
        $region45: #{tpu_custom_call.1} parent=23 // pred_check
          _
        $region46: #{tpu_custom_call.1} parent=23 // pred_check_branch
          %215 = sbr.rel target = $region48
        $region47: #{tpu_custom_call.1} parent=23 // pred_region
          %216 = sst [smem:[#allocation12]] [#allocation21]
          %217 = sst [smem:[#allocation13]] [#allocation20]
        $region48: #{tpu_custom_call.1} parent=23 // pred_fallthru
          _
        %219 = shalt.err (0)
        %s221 = sshll.u32 %s212, 4
        %s222 = int_to_ptr.vmem [resolvable:$true] %s221
        %224 = dma.hbm_to_vmem [thread:$0]  %s211, 16, %s222, %s213
        %s225 = sadd.s32 %s142, 5
        %s226 = sld [smem:[#allocation5 + %s225]]
        %s227 = smul.addr %s226, 16
        %s228 = scalar_lea.hbm %s1, %s227
        %s229 = scalar_lea.vmem [#allocation2], 5
        %s230 = scalar_lea.sflag [#allocation3], 5
        // Predicated region
        $region49: #{tpu_custom_call.1} parent=23 // pred_check
          _
        $region50: #{tpu_custom_call.1} parent=23 // pred_check_branch
          %232 = sbr.rel target = $region52
        $region51: #{tpu_custom_call.1} parent=23 // pred_region
          %233 = sst [smem:[#allocation12]] [#allocation23]
          %234 = sst [smem:[#allocation13]] [#allocation22]
        $region52: #{tpu_custom_call.1} parent=23 // pred_fallthru
          _
        %236 = shalt.err (0)
        %s238 = sshll.u32 %s229, 4
        %s239 = int_to_ptr.vmem [resolvable:$true] %s238
        %241 = dma.hbm_to_vmem [thread:$0]  %s228, 16, %s239, %s230
        %s242 = sadd.s32 %s142, 6
        %s243 = sld [smem:[#allocation5 + %s242]]
        %s244 = smul.addr %s243, 16
        %s245 = scalar_lea.hbm %s1, %s244
        %s246 = scalar_lea.vmem [#allocation2], 6
        %s247 = scalar_lea.sflag [#allocation3], 6
        // Predicated region
        $region53: #{tpu_custom_call.1} parent=23 // pred_check
          _
        $region54: #{tpu_custom_call.1} parent=23 // pred_check_branch
          %249 = sbr.rel target = $region56
        $region55: #{tpu_custom_call.1} parent=23 // pred_region
          %250 = sst [smem:[#allocation12]] [#allocation25]
          %251 = sst [smem:[#allocation13]] [#allocation24]
        $region56: #{tpu_custom_call.1} parent=23 // pred_fallthru
          _
        %253 = shalt.err (0)
        %s255 = sshll.u32 %s246, 4
        %s256 = int_to_ptr.vmem [resolvable:$true] %s255
        %258 = dma.hbm_to_vmem [thread:$0]  %s245, 16, %s256, %s247
        %s259 = sadd.s32 %s142, 7
        %s260 = sld [smem:[#allocation5 + %s259]]
        %s261 = smul.addr %s260, 16
        %s262 = scalar_lea.hbm %s1, %s261
        %s263 = scalar_lea.vmem [#allocation2], 7
        %s264 = scalar_lea.sflag [#allocation3], 7
        // Predicated region
        $region57: #{tpu_custom_call.1} parent=23 // pred_check
          _
        $region58: #{tpu_custom_call.1} parent=23 // pred_check_branch
          %266 = sbr.rel target = $region60
        $region59: #{tpu_custom_call.1} parent=23 // pred_region
          %267 = sst [smem:[#allocation12]] [#allocation27]
          %268 = sst [smem:[#allocation13]] [#allocation26]
        $region60: #{tpu_custom_call.1} parent=23 // pred_fallthru
          _
        %270 = shalt.err (0)
        %s272 = sshll.u32 %s263, 4
        %s273 = int_to_ptr.vmem [resolvable:$true] %s272
        %275 = dma.hbm_to_vmem [thread:$0]  %s262, 16, %s273, %s264
        %s276 = sadd.s32 %s142, 8
        %s277 = sld [smem:[#allocation5 + %s276]]
        %s278 = smul.addr %s277, 16
        %s279 = scalar_lea.hbm %s1, %s278
        %s280 = scalar_lea.vmem [#allocation2], 8
        %s281 = scalar_lea.sflag [#allocation3], 8
        // Predicated region
        $region61: #{tpu_custom_call.1} parent=23 // pred_check
          _
        $region62: #{tpu_custom_call.1} parent=23 // pred_check_branch
          %283 = sbr.rel target = $region64
        $region63: #{tpu_custom_call.1} parent=23 // pred_region
          %284 = sst [smem:[#allocation12]] [#allocation29]
          %285 = sst [smem:[#allocation13]] [#allocation28]
        $region64: #{tpu_custom_call.1} parent=23 // pred_fallthru
          _
        %287 = shalt.err (0)
        %s289 = sshll.u32 %s280, 4
        %s290 = int_to_ptr.vmem [resolvable:$true] %s289
        %292 = dma.hbm_to_vmem [thread:$0]  %s279, 16, %s290, %s281
        %s293 = sadd.s32 %s142, 9
        %s294 = sld [smem:[#allocation5 + %s293]]
        %s295 = smul.addr %s294, 16
        %s296 = scalar_lea.hbm %s1, %s295
        %s297 = scalar_lea.vmem [#allocation2], 9
        %s298 = scalar_lea.sflag [#allocation3], 9
        // Predicated region
        $region65: #{tpu_custom_call.1} parent=23 // pred_check
          _
        $region66: #{tpu_custom_call.1} parent=23 // pred_check_branch
          %300 = sbr.rel target = $region68
        $region67: #{tpu_custom_call.1} parent=23 // pred_region
          %301 = sst [smem:[#allocation12]] [#allocation31]
          %302 = sst [smem:[#allocation13]] [#allocation30]
        $region68: #{tpu_custom_call.1} parent=23 // pred_fallthru
          _
        %304 = shalt.err (0)
        %s306 = sshll.u32 %s297, 4
        %s307 = int_to_ptr.vmem [resolvable:$true] %s306
        %309 = dma.hbm_to_vmem [thread:$0]  %s296, 16, %s307, %s298
        %s310 = sadd.s32 %s142, 10
        %s311 = sld [smem:[#allocation5 + %s310]]
        %s312 = smul.addr %s311, 16
        %s313 = scalar_lea.hbm %s1, %s312
        %s314 = scalar_lea.vmem [#allocation2], 10
        %s315 = scalar_lea.sflag [#allocation3], 10
        // Predicated region
        $region69: #{tpu_custom_call.1} parent=23 // pred_check
          _
        $region70: #{tpu_custom_call.1} parent=23 // pred_check_branch
          %317 = sbr.rel target = $region72
        $region71: #{tpu_custom_call.1} parent=23 // pred_region
          %318 = sst [smem:[#allocation12]] [#allocation33]
          %319 = sst [smem:[#allocation13]] [#allocation32]
        $region72: #{tpu_custom_call.1} parent=23 // pred_fallthru
          _
        %321 = shalt.err (0)
        %s323 = sshll.u32 %s314, 4
        %s324 = int_to_ptr.vmem [resolvable:$true] %s323
        %326 = dma.hbm_to_vmem [thread:$0]  %s313, 16, %s324, %s315
        %s327 = sadd.s32 %s142, 11
        %s328 = sld [smem:[#allocation5 + %s327]]
        %s329 = smul.addr %s328, 16
        %s330 = scalar_lea.hbm %s1, %s329
        %s331 = scalar_lea.vmem [#allocation2], 11
        %s332 = scalar_lea.sflag [#allocation3], 11
        // Predicated region
        $region73: #{tpu_custom_call.1} parent=23 // pred_check
          _
        $region74: #{tpu_custom_call.1} parent=23 // pred_check_branch
          %334 = sbr.rel target = $region76
        $region75: #{tpu_custom_call.1} parent=23 // pred_region
          %335 = sst [smem:[#allocation12]] [#allocation35]
          %336 = sst [smem:[#allocation13]] [#allocation34]
        $region76: #{tpu_custom_call.1} parent=23 // pred_fallthru
          _
        %338 = shalt.err (0)
        %s340 = sshll.u32 %s331, 4
        %s341 = int_to_ptr.vmem [resolvable:$true] %s340
        %343 = dma.hbm_to_vmem [thread:$0]  %s330, 16, %s341, %s332
        %s344 = sadd.s32 %s142, 12
        %s345 = sld [smem:[#allocation5 + %s344]]
        %s346 = smul.addr %s345, 16
        %s347 = scalar_lea.hbm %s1, %s346
        %s348 = scalar_lea.vmem [#allocation2], 12
        %s349 = scalar_lea.sflag [#allocation3], 12
        // Predicated region
        $region77: #{tpu_custom_call.1} parent=23 // pred_check
          _
        $region78: #{tpu_custom_call.1} parent=23 // pred_check_branch
          %351 = sbr.rel target = $region80
        $region79: #{tpu_custom_call.1} parent=23 // pred_region
          %352 = sst [smem:[#allocation12]] [#allocation37]
          %353 = sst [smem:[#allocation13]] [#allocation36]
        $region80: #{tpu_custom_call.1} parent=23 // pred_fallthru
          _
        %355 = shalt.err (0)
        %s357 = sshll.u32 %s348, 4
        %s358 = int_to_ptr.vmem [resolvable:$true] %s357
        %360 = dma.hbm_to_vmem [thread:$0]  %s347, 16, %s358, %s349
        %s361 = sadd.s32 %s142, 13
        %s362 = sld [smem:[#allocation5 + %s361]]
        %s363 = smul.addr %s362, 16
        %s364 = scalar_lea.hbm %s1, %s363
        %s365 = scalar_lea.vmem [#allocation2], 13
        %s366 = scalar_lea.sflag [#allocation3], 13
        // Predicated region
        $region81: #{tpu_custom_call.1} parent=23 // pred_check
          _
        $region82: #{tpu_custom_call.1} parent=23 // pred_check_branch
          %368 = sbr.rel target = $region84
        $region83: #{tpu_custom_call.1} parent=23 // pred_region
          %369 = sst [smem:[#allocation12]] [#allocation39]
          %370 = sst [smem:[#allocation13]] [#allocation38]
        $region84: #{tpu_custom_call.1} parent=23 // pred_fallthru
          _
        %372 = shalt.err (0)
        %s374 = sshll.u32 %s365, 4
        %s375 = int_to_ptr.vmem [resolvable:$true] %s374
        %377 = dma.hbm_to_vmem [thread:$0]  %s364, 16, %s375, %s366
        %s378 = sadd.s32 %s142, 14
        %s379 = sld [smem:[#allocation5 + %s378]]
        %s380 = smul.addr %s379, 16
        %s381 = scalar_lea.hbm %s1, %s380
        %s382 = scalar_lea.vmem [#allocation2], 14
        %s383 = scalar_lea.sflag [#allocation3], 14
        // Predicated region
        $region85: #{tpu_custom_call.1} parent=23 // pred_check
          _
        $region86: #{tpu_custom_call.1} parent=23 // pred_check_branch
          %385 = sbr.rel target = $region88
        $region87: #{tpu_custom_call.1} parent=23 // pred_region
          %386 = sst [smem:[#allocation12]] [#allocation41]
          %387 = sst [smem:[#allocation13]] [#allocation40]
        $region88: #{tpu_custom_call.1} parent=23 // pred_fallthru
          _
        %389 = shalt.err (0)
        %s391 = sshll.u32 %s382, 4
        %s392 = int_to_ptr.vmem [resolvable:$true] %s391
        %394 = dma.hbm_to_vmem [thread:$0]  %s381, 16, %s392, %s383
        %s395 = sadd.s32 %s142, 15
        %s396 = sld [smem:[#allocation5 + %s395]]
        %s397 = smul.addr %s396, 16
        %s398 = scalar_lea.hbm %s1, %s397
        %s399 = scalar_lea.vmem [#allocation2], 15
        %s400 = scalar_lea.sflag [#allocation3], 15
        // Predicated region
        $region89: #{tpu_custom_call.1} parent=23 // pred_check
          _
        $region90: #{tpu_custom_call.1} parent=23 // pred_check_branch
          %402 = sbr.rel target = $region92
        $region91: #{tpu_custom_call.1} parent=23 // pred_region
          %403 = sst [smem:[#allocation12]] [#allocation43]
          %404 = sst [smem:[#allocation13]] [#allocation42]
        $region92: #{tpu_custom_call.1} parent=23 // pred_fallthru
          _
        %406 = shalt.err (0)
        %s408 = sshll.u32 %s399, 4
        %s409 = int_to_ptr.vmem [resolvable:$true] %s408
        %411 = dma.hbm_to_vmem [thread:$0]  %s398, 16, %s409, %s400
        %s412 = smul.u32 1, 1
        %s413 = sshll.u32 %s412, 4
        %414 = dma.done [#allocation3], %s413
        %s415 = sshll.u32 %s412, 4
        %416 = dma.done %s162, %s415
        %s417 = sshll.u32 %s412, 4
        %418 = dma.done %s179, %s417
        %s419 = sshll.u32 %s412, 4
        %420 = dma.done %s196, %s419
        %s421 = sshll.u32 %s412, 4
        %422 = dma.done %s213, %s421
        %s423 = sshll.u32 %s412, 4
        %424 = dma.done %s230, %s423
        %s425 = sshll.u32 %s412, 4
        %426 = dma.done %s247, %s425
        %s427 = sshll.u32 %s412, 4
        %428 = dma.done %s264, %s427
        %s429 = sshll.u32 %s412, 4
        %430 = dma.done %s281, %s429
        %s431 = sshll.u32 %s412, 4
        %432 = dma.done %s298, %s431
        %s433 = sshll.u32 %s412, 4
        %434 = dma.done %s315, %s433
        %s435 = sshll.u32 %s412, 4
        %436 = dma.done %s332, %s435
        %s437 = sshll.u32 %s412, 4
        %438 = dma.done %s349, %s437
        %s439 = sshll.u32 %s412, 4
        %440 = dma.done %s366, %s439
        %s441 = sshll.u32 %s412, 4
        %442 = dma.done %s383, %s441
        %s443 = sshll.u32 %s412, 4
        %444 = dma.done %s400, %s443
        %v445 = vld [vmem:[#allocation2] sm:$0xff]
        %v446 = vld [vmem:[#allocation2 + $0x8] sm:$0xff]
        %v447 = vld [vmem:[#allocation6] sm:$0xff]
        %v448 = vld [vmem:[#allocation6 + $0x8] sm:$0xff]
        %v449 = vmul.f32 %v445, 11.313708
        %v450 = vmul.f32 %v446, 11.313708
        %v451 = vadd.f32 %v449, %v447
        %v452 = vadd.f32 %v450, %v448
        %453 = vst [vmem:[%s137] sm:$0xff] %v451
        %454 = vst [vmem:[%s137 + $0x8] sm:$0xff] %v452
        %s455 = sand.u32 %s70, 1
        %s456 = scalar_lea.sflag [#allocation8], %s455
        %s457 = sand.u32 %s70, 1
        %s458 = smul.addr %s457, 16
        %s459 = scalar_lea.vmem [#allocation9], %s458
        // Predicated region
        $region93: #{tpu_custom_call.1} parent=23 // pred_check
          %p460 = pneg %p80
        $region94: #{tpu_custom_call.1} parent=23 // pred_check_branch
          %462 = sbr.rel (%p460) target = $region96
        $region95: #{tpu_custom_call.1} parent=23 // pred_region
          %s463 = smul.u32 2, %s27
          %s465 = ssub.s32 256, 256
          %466 = vsyncadd %s456, %s465
          %s467 = smul.addr %s26, 2
          %s468 = sadd.s32 %s463, %s467
          %s469 = smul.addr %s468, 128
          %s470 = scalar_lea.hbm %s3, %s469
          %s471 = sshll.u32 %s459, 4
          %s472 = int_to_ptr.vmem [resolvable:$true] %s471
          %477 = dma.vmem_to_hbm [thread:$0]  %s472, 256, %s470, %s456, 128, 128, 8
        $region96: #{tpu_custom_call.1} parent=23 // pred_fallthru
          _
      $region24: #{tpu_custom_call.1} parent=5 // pred_fallthru
        _
      %p478 = scmp.le.s32.totalorder 2, %s17
      // Predicated region
      $region97: #{tpu_custom_call.1} parent=5 // pred_check
        %p479 = pneg %p478
      $region98: #{tpu_custom_call.1} parent=5 // pred_check_branch
        %481 = sbr.rel (%p479) target = $region100
      $region99: #{tpu_custom_call.1} parent=5 // pred_region
        %s482 = ssub.s32 %s17, 2
        // Predicated region
        $region101: #{tpu_custom_call.1} parent=99 // pred_check
          %p483 = pneg %p86
        $region102: #{tpu_custom_call.1} parent=99 // pred_check_branch
          %485 = sbr.rel (%p483) target = $region104
        $region103: #{tpu_custom_call.1} parent=99 // pred_region
          %s486 = sand.u32 %s71, 1
          %s487 = scalar_lea.sflag [#allocation8], %s486
          %s488 = sand.u32 %s71, 1
          %s489 = smul.addr %s488, 16
          %s490 = scalar_lea.vmem [#allocation9], %s489
          %491 = dma.done %s487, 256
        $region104: #{tpu_custom_call.1} parent=99 // pred_fallthru
          _
      $region100: #{tpu_custom_call.1} parent=5 // pred_fallthru
        _
    $region6: #{tpu_custom_call.1} parent=1 // loop_footer
      %s21 = sadd.s32 1, %s17
    $region7: #{tpu_custom_call.1} parent=1 // loop_footer_branch
      %16 = sbr.rel target = $region3
    $region8: #{tpu_custom_call.1} parent=1 // loop_exit
      _
    %492 = vsyncpa [#allocation7], 1
    %s493 = scalar_lea.sflag [#allocation7], 1
    %494 = vsyncpa %s493, 1
    %495 = vsyncpa [#allocation8], 1
    %s496 = scalar_lea.sflag [#allocation8], 1
    %497 = vsyncpa %s496, 1
  %498 = vsyncmov [#allocation3]
  %s499 = vpop.sfrf %498
  %p500 = scmp.eq.s32.totalorder %s499, 0
  %p501 = pneg %p500
  %503 = shalt.err (%p501)
  %s504 = scalar_lea.sflag [#allocation3], 1
  %505 = vsyncmov %s504
  %s506 = vpop.sfrf %505
  %p507 = scmp.eq.s32.totalorder %s506, 0
  %p508 = pneg %p507
  %510 = shalt.err (%p508)
  %s511 = scalar_lea.sflag [#allocation3], 2
  %512 = vsyncmov %s511
  %s513 = vpop.sfrf %512
  %p514 = scmp.eq.s32.totalorder %s513, 0
  %p515 = pneg %p514
  %517 = shalt.err (%p515)
  %s518 = scalar_lea.sflag [#allocation3], 3
  %519 = vsyncmov %s518
  %s520 = vpop.sfrf %519
  %p521 = scmp.eq.s32.totalorder %s520, 0
  %p522 = pneg %p521
  %524 = shalt.err (%p522)
  %s525 = scalar_lea.sflag [#allocation3], 4
  %526 = vsyncmov %s525
  %s527 = vpop.sfrf %526
  %p528 = scmp.eq.s32.totalorder %s527, 0
  %p529 = pneg %p528
  %531 = shalt.err (%p529)
  %s532 = scalar_lea.sflag [#allocation3], 5
  %533 = vsyncmov %s532
  %s534 = vpop.sfrf %533
  %p535 = scmp.eq.s32.totalorder %s534, 0
  %p536 = pneg %p535
  %538 = shalt.err (%p536)
  %s539 = scalar_lea.sflag [#allocation3], 6
  %540 = vsyncmov %s539
  %s541 = vpop.sfrf %540
  %p542 = scmp.eq.s32.totalorder %s541, 0
  %p543 = pneg %p542
  %545 = shalt.err (%p543)
  %s546 = scalar_lea.sflag [#allocation3], 7
  %547 = vsyncmov %s546
  %s548 = vpop.sfrf %547
  %p549 = scmp.eq.s32.totalorder %s548, 0
  %p550 = pneg %p549
  %552 = shalt.err (%p550)
  %s553 = scalar_lea.sflag [#allocation3], 8
  %554 = vsyncmov %s553
  %s555 = vpop.sfrf %554
  %p556 = scmp.eq.s32.totalorder %s555, 0
  %p557 = pneg %p556
  %559 = shalt.err (%p557)
  %s560 = scalar_lea.sflag [#allocation3], 9
  %561 = vsyncmov %s560
  %s562 = vpop.sfrf %561
  %p563 = scmp.eq.s32.totalorder %s562, 0
  %p564 = pneg %p563
  %566 = shalt.err (%p564)
  %s567 = scalar_lea.sflag [#allocation3], 10
  %568 = vsyncmov %s567
  %s569 = vpop.sfrf %568
  %p570 = scmp.eq.s32.totalorder %s569, 0
  %p571 = pneg %p570
  %573 = shalt.err (%p571)
  %s574 = scalar_lea.sflag [#allocation3], 11
  %575 = vsyncmov %s574
  %s576 = vpop.sfrf %575
  %p577 = scmp.eq.s32.totalorder %s576, 0
  %p578 = pneg %p577
  %580 = shalt.err (%p578)
  %s581 = scalar_lea.sflag [#allocation3], 12
  %582 = vsyncmov %s581
  %s583 = vpop.sfrf %582
  %p584 = scmp.eq.s32.totalorder %s583, 0
  %p585 = pneg %p584
  %587 = shalt.err (%p585)
  %s588 = scalar_lea.sflag [#allocation3], 13
  %589 = vsyncmov %s588
  %s590 = vpop.sfrf %589
  %p591 = scmp.eq.s32.totalorder %s590, 0
  %p592 = pneg %p591
  %594 = shalt.err (%p592)
  %s595 = scalar_lea.sflag [#allocation3], 14
  %596 = vsyncmov %s595
  %s597 = vpop.sfrf %596
  %p598 = scmp.eq.s32.totalorder %s597, 0
  %p599 = pneg %p598
  %601 = shalt.err (%p599)
  %s602 = scalar_lea.sflag [#allocation3], 15
  %603 = vsyncmov %s602
  %s604 = vpop.sfrf %603
  %p605 = scmp.eq.s32.totalorder %s604, 0
  %p606 = pneg %p605
  %608 = shalt.err (%p606)

</llo_original>
